<compile_context>
chip_gen: v7x
topology: tpu7x:2x2x1
jax: 0.10.0
libtpu: 0.0.40
codegen_flags: <defaults>
</compile_context>

<pallas_src>
import jax
import jax.numpy as jnp
from jax.experimental import pallas as pl
from jax.experimental.pallas import tpu as pltpu


OUT_PAD = 128    # lane-dense padded output width
HMID_PAD = 128   # pred_head hidden padded to native lane / MXU width


# ----------------------------- Pallas kernel --------------------------------
def deepeik_kernel(ds_ref, ps_ref, dkg_ref, pkg_ref, dt_ref,
                   wblk_ref, bblk_ref, w1_ref, b1_ref, w2_ref, b2_ref, out_ref):
    f32 = jnp.float32

    # In-kernel concat of the raw features (avoids a wrapper-side concat/cast pass
    # through HBM), then one block-diagonal matmul == all 5 first-stage projections.
    x = jnp.concatenate(
        [ds_ref[...], ps_ref[...], dkg_ref[...], pkg_ref[...], dt_ref[...]],
        axis=1).astype(jnp.bfloat16)

    # stage 1: h1 = [h_drug_struct | h_prot_struct | h_kg | h_text]   (bias in f32)
    h1 = jnp.dot(x, wblk_ref[...], preferred_element_type=f32) + bblk_ref[...]

    # pred_head layer 1 (Linear over the concatenated hidden, padded to 128) + ReLU
    z1 = jnp.dot(h1.astype(w1_ref.dtype), w1_ref[...],
                 preferred_element_type=f32) + b1_ref[...]
    a1 = jnp.maximum(z1, 0.0)

    # pred_head layer 2, output padded to 128 lanes (unmasked store)
    out_ref[...] = (jnp.dot(a1.astype(w2_ref.dtype), w2_ref[...],
                            preferred_element_type=f32) + b2_ref[...]).astype(out_ref.dtype)


# ------------------------- wrapper-side weight fusion -------------------------
def prepare_fused_params(p, out_pad=OUT_PAD, hmid_pad=HMID_PAD):
    wd, wp, wkgd, wkgp, wt = p["wd"], p["wp"], p["wkgd"], p["wkgp"], p["wt"]
    Fd, Dd = wd.shape
    Fp, Dp = wp.shape
    Kd, P = wkgd.shape
    Kp, _ = wkgp.shape
    T, _ = wt.shape
    F_in = Fd + Fp + Kd + Kp + T
    H1 = Dd + Dp + 2 * P

    # block-structured stage-1 weight: concat(inputs) @ wblk == original split dots
    wblk = jnp.zeros((F_in, H1), jnp.float32)
    r = 0
    wblk = wblk.at[r:r + Fd, 0:Dd].set(wd);                               r += Fd
    wblk = wblk.at[r:r + Fp, Dd:Dd + Dp].set(wp);                         r += Fp
    wblk = wblk.at[r:r + Kd, Dd + Dp:Dd + Dp + P].set(wkgd);              r += Kd
    wblk = wblk.at[r:r + Kp, Dd + Dp:Dd + Dp + P].set(wkgp);              r += Kp
    wblk = wblk.at[r:r + T, Dd + Dp + P:Dd + Dp + 2 * P].set(wt)
    bblk = jnp.concatenate([p["bd"], p["bp"], p["bkg"], p["bt"]], axis=1)

    # pred_head layer-1 split weights -> single weight on the contiguous hidden,
    # hidden dim zero-padded to a lane-dense 128 (math unchanged).
    w1 = jnp.concatenate([p["w1d"], p["w1p"], p["w1k"], p["w1t"]], axis=0)   # (H1, Hmid)
    Hmid, pred_dim = p["w2"].shape
    hpad = max(hmid_pad, pl.cdiv(Hmid, 128) * 128)
    w1p = jnp.zeros((H1, hpad), jnp.float32).at[:, :Hmid].set(w1)
    b1p = jnp.zeros((1, hpad), jnp.float32).at[:, :Hmid].set(p["b1"])

    # lane-dense padded final layer (padded w2 rows/cols are zero)
    w2p = jnp.zeros((hpad, out_pad), jnp.float32).at[:Hmid, :pred_dim].set(p["w2"])
    b2p = jnp.zeros((1, out_pad), jnp.float32).at[:, :pred_dim].set(p["b2"])

    return {
        "wblk": wblk.astype(jnp.bfloat16),
        "bblk": bblk,                       # biases stay f32 (added post-accumulation)
        "w1": w1p.astype(jnp.bfloat16),
        "b1": b1p,
        "w2": w2p.astype(jnp.bfloat16),
        "b2": b2p,
        "pred_dim": pred_dim,
    }


# ------------------------------- forward wrapper ------------------------------
def _pick_batch_tile(B, max_tile=256):
    # Multiple of 16 (bf16 sublane packing). Aim for >=2 grid steps so v7x's two
    # TensorCores both get work; cap the tile so large batches still pipeline.
    half = pl.cdiv(B, 2)
    return min(max_tile, max(16, pl.cdiv(half, 16) * 16))


def deepeik_forward(inputs, fused, batch_tile=None, max_tile=256):
    feats = [inputs["drug_structure"], inputs["protein_structure"],
             inputs["drug_kg"], inputs["protein_kg"], inputs["drug_text"]]
    B = feats[0].shape[0]
    if batch_tile is None:
        batch_tile = _pick_batch_tile(B, max_tile)

    # Pad the batch up to a tile multiple (cheap, replaces the old hard assert).
    B_pad = pl.cdiv(B, batch_tile) * batch_tile
    if B_pad != B:
        feats = [jnp.pad(f, ((0, B_pad - B), (0, 0))) for f in feats]

    feat_dims = [f.shape[1] for f in feats]
    F_in = sum(feat_dims)
    H1 = fused["wblk"].shape[1]
    Hmid = fused["w1"].shape[1]
    n_out = fused["w2"].shape[1]
    grid = (B_pad // batch_tile,)

    flops = 2 * B_pad * (F_in * H1 + H1 * Hmid + Hmid * n_out)
    bytes_accessed = (sum(f.size for f in feats) * 4
                      + (fused["wblk"].size + fused["w1"].size + fused["w2"].size) * 2
                      + (fused["bblk"].size + fused["b1"].size + fused["b2"].size) * 4
                      + B_pad * n_out * 4)

    feat_specs = [pl.BlockSpec((batch_tile, d), lambda i: (i, 0)) for d in feat_dims]
    weight_specs = [
        pl.BlockSpec((F_in, H1), lambda i: (0, 0)),      # resident weights / biases
        pl.BlockSpec((1, H1), lambda i: (0, 0)),
        pl.BlockSpec((H1, Hmid), lambda i: (0, 0)),
        pl.BlockSpec((1, Hmid), lambda i: (0, 0)),
        pl.BlockSpec((Hmid, n_out), lambda i: (0, 0)),
        pl.BlockSpec((1, n_out), lambda i: (0, 0)),
    ]

    # NOTE(v5e): output could be emitted as bf16 to halve store bytes (1 vst slot);
    # kept f32 here for tight parity with the f32 reference.
    out = pl.pallas_call(
        deepeik_kernel,
        out_shape=jax.ShapeDtypeStruct((B_pad, n_out), jnp.float32),
        grid_spec=pltpu.PrefetchScalarGridSpec(
            num_scalar_prefetch=0,
            grid=grid,
            in_specs=feat_specs + weight_specs,
            out_specs=pl.BlockSpec((batch_tile, n_out), lambda i: (i, 0)),
        ),
        compiler_params=pltpu.CompilerParams(dimension_semantics=("parallel",)),
        cost_estimate=pl.CostEstimate(flops=flops, transcendentals=0,
                                      bytes_accessed=bytes_accessed),
    )(*feats, fused["wblk"], fused["bblk"], fused["w1"], fused["b1"],
      fused["w2"], fused["b2"])

    return out[:B, :fused["pred_dim"]]


# ------------------- precision-matched reference (pure JAX) -------------------
def deepeik_reference(inputs, p):
    # Mirrors the kernel's numerics: bf16 operands, f32 accumulation, f32 biases.
    bf16 = jnp.bfloat16
    dot = lambda a, b: jnp.dot(a.astype(bf16), b.astype(bf16),
                               preferred_element_type=jnp.float32)
    h_d = dot(inputs["drug_structure"], p["wd"]) + p["bd"]
    h_p = dot(inputs["protein_structure"], p["wp"]) + p["bp"]
    h_structure = jnp.concatenate([h_d, h_p], axis=1)
    h_kg = dot(inputs["drug_kg"], p["wkgd"]) + dot(inputs["protein_kg"], p["wkgp"]) + p["bkg"]
    h_text = dot(inputs["drug_text"], p["wt"]) + p["bt"]
    h = jnp.concatenate([h_structure, h_kg, h_text], axis=1)
    w1 = jnp.concatenate([p["w1d"], p["w1p"], p["w1k"], p["w1t"]], axis=0)
    a1 = jnp.maximum(dot(h, w1) + p["b1"], 0.0)
    return dot(a1, p["w2"]) + p["b2"]


# ----------------------------- param / input init -----------------------------
def init_params(key, dims):
    Fd, Fp, Dd, Dp, Kd, Kp, P, T, Hmid, pred_dim = (
        dims["Fd"], dims["Fp"], dims["Dd"], dims["Dp"], dims["Kd"], dims["Kp"],
        dims["P"], dims["T"], dims["Hmid"], dims["pred_dim"])
    keys = jax.random.split(key, 16)
    w = lambda k, s: (jax.random.normal(k, s, jnp.float32) * 0.05)
    return {
        "wd":   w(keys[0], (Fd, Dd)),   "bd":  w(keys[1], (1, Dd)),
        "wp":   w(keys[2], (Fp, Dp)),   "bp":  w(keys[3], (1, Dp)),
        "wkgd": w(keys[4], (Kd, P)),    "wkgp": w(keys[5], (Kp, P)),
        "bkg":  w(keys[6], (1, P)),
        "wt":   w(keys[7], (T, P)),     "bt":  w(keys[8], (1, P)),
        "w1d":  w(keys[9], (Dd, Hmid)), "w1p": w(keys[10], (Dp, Hmid)),
        "w1k":  w(keys[11], (P, Hmid)), "w1t": w(keys[12], (P, Hmid)),
        "b1":   w(keys[13], (1, Hmid)),
        "w2":   w(keys[14], (Hmid, pred_dim)), "b2": w(keys[15], (1, pred_dim)),
    }


if __name__ == "__main__":
    dims = dict(Fd=32, Fp=32,   # raw structure feature dims fed to the encoders
                Dd=64, Dp=64,   # encoder output dims -> structure_hidden_dim = 128
                Kd=16, Kp=16,   # KG embedding dims
                P=32,           # projection_dim
                T=48,           # text_dim
                Hmid=64,        # pred_head hidden dim (padded to 128 in the kernel)
                pred_dim=2)
    B = 32                      # demo batch: auto tile = 16 -> 2 parallel grid steps

    root = jax.random.PRNGKey(0)
    k_in, k_par = jax.random.split(root)
    ki = jax.random.split(k_in, 5)
    inputs = {
        "drug_structure":    jax.random.normal(ki[0], (B, dims["Fd"]), jnp.float32),
        "protein_structure": jax.random.normal(ki[1], (B, dims["Fp"]), jnp.float32),
        "drug_kg":           jax.random.normal(ki[2], (B, dims["Kd"]), jnp.float32),
        "protein_kg":        jax.random.normal(ki[3], (B, dims["Kp"]), jnp.float32),
        "drug_text":         jax.random.normal(ki[4], (B, dims["T"]), jnp.float32),
    }
    params = init_params(k_par, dims)
    fused = prepare_fused_params(params)

    out = deepeik_forward(inputs, fused)
    out = jax.block_until_ready(out)

    ref = deepeik_reference(inputs, params)

    assert out.shape == (B, dims["pred_dim"])
    assert jnp.allclose(out, ref, atol=1e-2, rtol=1e-2), "Pallas output mismatch vs JAX reference"
    print("KERNEL_OK")
</pallas_src>

<mosaic_0001>
module attributes {stable_mosaic.version = 11 : i64} {
  func.func @deepeik_kernel(%arg0: i32, %arg1: memref<16x32xf32, #tpu.memory_space<vmem>>, %arg2: memref<16x32xf32, #tpu.memory_space<vmem>>, %arg3: memref<16x16xf32, #tpu.memory_space<vmem>>, %arg4: memref<16x16xf32, #tpu.memory_space<vmem>>, %arg5: memref<16x48xf32, #tpu.memory_space<vmem>>, %arg6: memref<144x192xbf16, #tpu.memory_space<vmem>>, %arg7: memref<1x192xf32, #tpu.memory_space<vmem>>, %arg8: memref<192x128xbf16, #tpu.memory_space<vmem>>, %arg9: memref<1x128xf32, #tpu.memory_space<vmem>>, %arg10: memref<128x128xbf16, #tpu.memory_space<vmem>>, %arg11: memref<1x128xf32, #tpu.memory_space<vmem>>, %arg12: memref<16x128xf32, #tpu.memory_space<vmem>>) attributes {dimension_semantics = [#tpu.dimension_semantics<parallel>], iteration_bounds = array<i64: 2>, scalar_prefetch = 0 : i64, scratch_operands = 0 : i64, tpu.core_type = #tpu.core_type<tc>, window_params = [{transform_indices = @transform_0, window_bounds = array<i64: 16, 32>}, {transform_indices = @transform_1, window_bounds = array<i64: 16, 32>}, {transform_indices = @transform_2, window_bounds = array<i64: 16, 16>}, {transform_indices = @transform_3, window_bounds = array<i64: 16, 16>}, {transform_indices = @transform_4, window_bounds = array<i64: 16, 48>}, {pipeline_mode = #tpu.pipeline_mode<synchronous>, transform_indices = @transform_5, window_bounds = array<i64: 144, 192>}, {pipeline_mode = #tpu.pipeline_mode<synchronous>, transform_indices = @transform_6, window_bounds = array<i64: 1, 192>}, {pipeline_mode = #tpu.pipeline_mode<synchronous>, transform_indices = @transform_7, window_bounds = array<i64: 192, 128>}, {pipeline_mode = #tpu.pipeline_mode<synchronous>, transform_indices = @transform_8, window_bounds = array<i64: 1, 128>}, {pipeline_mode = #tpu.pipeline_mode<synchronous>, transform_indices = @transform_9, window_bounds = array<i64: 128, 128>}, {pipeline_mode = #tpu.pipeline_mode<synchronous>, transform_indices = @transform_10, window_bounds = array<i64: 1, 128>}, {transform_indices = @transform_11, window_bounds = array<i64: 16, 128>}]} {
    %c0 = arith.constant 0 : index
    %c0_0 = arith.constant 0 : index
    %0 = vector.load %arg1[%c0, %c0_0] : memref<16x32xf32, #tpu.memory_space<vmem>>, vector<16x32xf32>
    %c0_1 = arith.constant 0 : index
    %c0_2 = arith.constant 0 : index
    %1 = vector.load %arg2[%c0_1, %c0_2] : memref<16x32xf32, #tpu.memory_space<vmem>>, vector<16x32xf32>
    %c0_3 = arith.constant 0 : index
    %c0_4 = arith.constant 0 : index
    %2 = vector.load %arg3[%c0_3, %c0_4] : memref<16x16xf32, #tpu.memory_space<vmem>>, vector<16x16xf32>
    %c0_5 = arith.constant 0 : index
    %c0_6 = arith.constant 0 : index
    %3 = vector.load %arg4[%c0_5, %c0_6] : memref<16x16xf32, #tpu.memory_space<vmem>>, vector<16x16xf32>
    %c0_7 = arith.constant 0 : index
    %c0_8 = arith.constant 0 : index
    %4 = vector.load %arg5[%c0_7, %c0_8] : memref<16x48xf32, #tpu.memory_space<vmem>>, vector<16x48xf32>
    %5 = tpu.concatenate %0, %1, %2, %3, %4 in 1 : vector<16x32xf32>, vector<16x32xf32>, vector<16x16xf32>, vector<16x16xf32>, vector<16x48xf32> -> vector<16x144xf32>
    %6 = arith.truncf %5 : vector<16x144xf32> to vector<16x144xbf16>
    %c0_9 = arith.constant 0 : index
    %c0_10 = arith.constant 0 : index
    %7 = vector.load %arg6[%c0_9, %c0_10] : memref<144x192xbf16, #tpu.memory_space<vmem>>, vector<144x192xbf16>
    %cst = arith.constant dense<0.000000e+00> : vector<16x192xf32>
    %8 = tpu.matmul %6, %7, %cst {dimension_numbers = #tpu.dot_dimension_numbers<[1], [0], [0], [1], [0, 0, 1, 1], [], []>} : vector<16x144xbf16>, vector<144x192xbf16>, vector<16x192xf32> -> vector<16x192xf32>
    %c0_11 = arith.constant 0 : index
    %c0_12 = arith.constant 0 : index
    %9 = vector.load %arg7[%c0_11, %c0_12] : memref<1x192xf32, #tpu.memory_space<vmem>>, vector<1x192xf32>
    %10 = vector.broadcast %9 : vector<1x192xf32> to vector<16x192xf32>
    %11 = arith.addf %8, %10 : vector<16x192xf32>
    %12 = arith.truncf %11 : vector<16x192xf32> to vector<16x192xbf16>
    %c0_13 = arith.constant 0 : index
    %c0_14 = arith.constant 0 : index
    %13 = vector.load %arg8[%c0_13, %c0_14] : memref<192x128xbf16, #tpu.memory_space<vmem>>, vector<192x128xbf16>
    %cst_15 = arith.constant dense<0.000000e+00> : vector<16x128xf32>
    %14 = tpu.matmul %12, %13, %cst_15 {dimension_numbers = #tpu.dot_dimension_numbers<[1], [0], [0], [1], [0, 0, 1, 1], [], []>} : vector<16x192xbf16>, vector<192x128xbf16>, vector<16x128xf32> -> vector<16x128xf32>
    %c0_16 = arith.constant 0 : index
    %c0_17 = arith.constant 0 : index
    %15 = vector.load %arg9[%c0_16, %c0_17] : memref<1x128xf32, #tpu.memory_space<vmem>>, vector<1x128xf32>
    %16 = vector.broadcast %15 : vector<1x128xf32> to vector<16x128xf32>
    %17 = arith.addf %14, %16 : vector<16x128xf32>
    %cst_18 = arith.constant 0.000000e+00 : f32
    %18 = vector.broadcast %cst_18 : f32 to vector<16x128xf32>
    %19 = arith.maximumf %17, %18 : vector<16x128xf32>
    %20 = arith.truncf %19 : vector<16x128xf32> to vector<16x128xbf16>
    %c0_19 = arith.constant 0 : index
    %c0_20 = arith.constant 0 : index
    %21 = vector.load %arg10[%c0_19, %c0_20] : memref<128x128xbf16, #tpu.memory_space<vmem>>, vector<128x128xbf16>
    %cst_21 = arith.constant dense<0.000000e+00> : vector<16x128xf32>
    %22 = tpu.matmul %20, %21, %cst_21 {dimension_numbers = #tpu.dot_dimension_numbers<[1], [0], [0], [1], [0, 0, 1, 1], [], []>} : vector<16x128xbf16>, vector<128x128xbf16>, vector<16x128xf32> -> vector<16x128xf32>
    %c0_22 = arith.constant 0 : index
    %c0_23 = arith.constant 0 : index
    %23 = vector.load %arg11[%c0_22, %c0_23] : memref<1x128xf32, #tpu.memory_space<vmem>>, vector<1x128xf32>
    %24 = vector.broadcast %23 : vector<1x128xf32> to vector<16x128xf32>
    %25 = arith.addf %22, %24 : vector<16x128xf32>
    %c0_24 = arith.constant 0 : index
    %c0_25 = arith.constant 0 : index
    %26 = vector.load %arg12[%c0_24, %c0_25] : memref<16x128xf32, #tpu.memory_space<vmem>>, vector<16x128xf32>
    tpu.vector_store %arg12[%c0_24, %c0_25], %25 {strides = array<i32>} : memref<16x128xf32, #tpu.memory_space<vmem>>, vector<16x128xf32>,
    return
  }
  func.func @transform_0(%arg0: i32) -> (i32, i32) {
    %c0_i32 = arith.constant 0 : i32
    %c0_i32_0 = arith.constant 0 : i32
    return %arg0, %c0_i32 : i32, i32
  }
  func.func @transform_1(%arg0: i32) -> (i32, i32) {
    %c0_i32 = arith.constant 0 : i32
    %c0_i32_0 = arith.constant 0 : i32
    return %arg0, %c0_i32 : i32, i32
  }
  func.func @transform_2(%arg0: i32) -> (i32, i32) {
    %c0_i32 = arith.constant 0 : i32
    %c0_i32_0 = arith.constant 0 : i32
    return %arg0, %c0_i32 : i32, i32
  }
  func.func @transform_3(%arg0: i32) -> (i32, i32) {
    %c0_i32 = arith.constant 0 : i32
    %c0_i32_0 = arith.constant 0 : i32
    return %arg0, %c0_i32 : i32, i32
  }
  func.func @transform_4(%arg0: i32) -> (i32, i32) {
    %c0_i32 = arith.constant 0 : i32
    %c0_i32_0 = arith.constant 0 : i32
    return %arg0, %c0_i32 : i32, i32
  }
  func.func @transform_5(%arg0: i32) -> (i32, i32) {
    %c0_i32 = arith.constant 0 : i32
    %c0_i32_0 = arith.constant 0 : i32
    %c0_i32_1 = arith.constant 0 : i32
    return %c0_i32, %c0_i32_0 : i32, i32
  }
  func.func @transform_6(%arg0: i32) -> (i32, i32) {
    %c0_i32 = arith.constant 0 : i32
    %c0_i32_0 = arith.constant 0 : i32
    %c0_i32_1 = arith.constant 0 : i32
    return %c0_i32, %c0_i32_0 : i32, i32
  }
  func.func @transform_7(%arg0: i32) -> (i32, i32) {
    %c0_i32 = arith.constant 0 : i32
    %c0_i32_0 = arith.constant 0 : i32
    %c0_i32_1 = arith.constant 0 : i32
    return %c0_i32, %c0_i32_0 : i32, i32
  }
  func.func @transform_8(%arg0: i32) -> (i32, i32) {
    %c0_i32 = arith.constant 0 : i32
    %c0_i32_0 = arith.constant 0 : i32
    %c0_i32_1 = arith.constant 0 : i32
    return %c0_i32, %c0_i32_0 : i32, i32
  }
  func.func @transform_9(%arg0: i32) -> (i32, i32) {
    %c0_i32 = arith.constant 0 : i32
    %c0_i32_0 = arith.constant 0 : i32
    %c0_i32_1 = arith.constant 0 : i32
    return %c0_i32, %c0_i32_0 : i32, i32
  }
  func.func @transform_10(%arg0: i32) -> (i32, i32) {
    %c0_i32 = arith.constant 0 : i32
    %c0_i32_0 = arith.constant 0 : i32
    %c0_i32_1 = arith.constant 0 : i32
    return %c0_i32, %c0_i32_0 : i32, i32
  }
  func.func @transform_11(%arg0: i32) -> (i32, i32) {
    %c0_i32 = arith.constant 0 : i32
    %c0_i32_0 = arith.constant 0 : i32
    return %arg0, %c0_i32 : i32, i32
  }
}

</mosaic_0001>

<llo_original>
// kernel: tpu_custom_call.1
$region0: #{tpu_custom_call.1}
  #allocation0 [shape = 'u32[]', space=smem, size = 0x4, offset = 0x4, fixed_abs, tag = 'smem constant byte address 0x4 - core index']
  #allocation1 [shape = 'u32[144,128]{1,0:T(1,128)}', space=vmem, size = 0x12000, scoped, tag = 'internal scratch']
  %s0 = inlined_call_operand.hbm [shape: f32[32,32], index: 0, kind: input, shape index: {}]
  %s1 = inlined_call_operand.hbm [shape: f32[32,32], index: 1, kind: input, shape index: {}]
  %s2 = inlined_call_operand.vmem [shape: f32[32,16], index: 2, kind: input, shape index: {}]
  %s3 = inlined_call_operand.vmem [shape: f32[32,16], index: 3, kind: input, shape index: {}]
  %s4 = inlined_call_operand.hbm [shape: f32[32,48], index: 4, kind: input, shape index: {}]
  %s5 = inlined_call_operand.hbm [shape: bf16[144,192], index: 5, kind: input, shape index: {}]
  %s6 = inlined_call_operand.vmem [shape: f32[1,192], index: 6, kind: input, shape index: {}]
  %s7 = inlined_call_operand.vmem [shape: bf16[192,128], index: 7, kind: input, shape index: {}]
  %s8 = inlined_call_operand.vmem [shape: f32[1,128], index: 8, kind: input, shape index: {}]
  %s9 = inlined_call_operand.hbm [shape: bf16[128,128], index: 9, kind: input, shape index: {}]
  %s10 = inlined_call_operand.vmem [shape: f32[1,128], index: 10, kind: input, shape index: {}]
  %s11 = inlined_call_operand.hbm [shape: f32[32,128], index: 11, kind: output, shape index: {}]
  %s12 = sld [smem:[#allocation0]]
  $region97: #{tpu_custom_call.1} parent=0
    _
  %s14 = ssub.s32 1, %s12
  %s15 = scalar_select 0, %s14, %s12
  $region1: #{tpu_custom_call.1} parent=0
    #allocation2 [shape = 'u8[16384]{0}', space=vmem, size = 0x4000, scoped, tag = 'input window, operand 0']
    #allocation3 [shape = 's32[2]{0}', space=sflag, size = 0x8, scoped, tag = 'scoped memory for tpu_custom_call.1']
    #allocation4 [shape = 's32[2]{0}', space=sflag, size = 0x8, scoped, tag = 'scoped memory for tpu_custom_call.1']
    #allocation5 [shape = 'u8[16384]{0}', space=vmem, size = 0x4000, scoped, tag = 'input window, operand 1']
    #allocation6 [shape = 's32[2]{0}', space=sflag, size = 0x8, scoped, tag = 'scoped memory for tpu_custom_call.1']
    #allocation7 [shape = 'u8[16384]{0}', space=vmem, size = 0x4000, scoped, tag = 'input window, operand 4']
    #allocation8 [shape = 'u8[73728]{0}', space=vmem, size = 0x12000, scoped, tag = 'input window, operand 5, single buffered']
    #allocation9 [shape = 's32[1]{0}', space=sflag, size = 0x4, scoped, tag = 'scoped memory for tpu_custom_call.1']
    #allocation10 [shape = 'u8[32768]{0}', space=vmem, size = 0x8000, scoped, tag = 'input window, operand 9, single buffered']
    #allocation11 [shape = 'u8[16384]{0}', space=vmem, size = 0x4000, scoped, tag = 'output window, operand 0']
    %16 = vsyncpa [#allocation3], 0
    %s17 = scalar_lea.sflag [#allocation3], 1
    %18 = vsyncpa %s17, 0
    %19 = vsyncpa [#allocation6], 0
    %s20 = scalar_lea.sflag [#allocation6], 1
    %21 = vsyncpa %s20, 0
    %22 = vsyncpa [#allocation9], 0
    %23 = vsyncpa [#allocation4], 0
    %s24 = scalar_lea.sflag [#allocation4], 1
    %25 = vsyncpa %s24, 0
    loop: start=0, step=1, limit=4
    $region2: #{tpu_custom_call.1} parent=1 // loop_pre_header
      _
    $region3: #{tpu_custom_call.1} parent=1 // loop_header
      %s27 = sphi 0, %s31
      %p28 = scmp.ge.s32.totalorder %s27, 4
      %s37 = sphi 0, %s39
      %s40 = sphi 0, %s37
      %s41 = sphi 0, %s40
      %s57 = sphi 0, %s41
      %s63 = sphi 0, %s65
      %s66 = sphi 0, %s63
      %s67 = sphi 0, %s66
      %s83 = sphi 0, %s67
      %s89 = sphi 0, %s91
      %s92 = sphi 0, %s89
      %s93 = sphi 0, %s92
      %s109 = sphi 0, %s93
      %s115 = sphi 0, %s117
      %s118 = sphi 0, %s115
      %s119 = sphi 0, %s118
      %s135 = sphi 0, %s119
      %s141 = sphi 0, %s143
      %s144 = sphi 0, %s141
      %s145 = sphi 0, %s144
      %s161 = sphi 0, %s145
      %s165 = sphi 0, %s165
      %s167 = sphi 0, %s165
      %s168 = sphi 0, %s167
      %s182 = sphi 0, %s168
      %s186 = sphi 0, %s186
      %s188 = sphi 0, %s186
      %s189 = sphi 0, %s188
      %s203 = sphi 0, %s189
      %s207 = sphi 0, %s207
      %s209 = sphi 0, %s207
      %s210 = sphi 0, %s209
      %s224 = sphi 0, %s210
      %s228 = sphi 0, %s228
      %s230 = sphi 0, %s228
      %s231 = sphi 0, %s230
      %s245 = sphi 0, %s231
      %s249 = sphi 0, %s249
      %s251 = sphi 0, %s249
      %s252 = sphi 0, %s251
      %s266 = sphi 0, %s252
      %s270 = sphi 0, %s270
      %s272 = sphi 0, %s270
      %s273 = sphi 0, %s272
      %s287 = sphi 0, %s273
      %s293 = sphi 0, %s295
      %s296 = sphi 0, %s293
      %s297 = sphi 0, %s296
      %s313 = sphi 0, %s297
    $region4: #{tpu_custom_call.1} parent=1 // loop_header_branch
      %30 = sbr.rel (%p28) target = $region8
    $region5: #{tpu_custom_call.1} parent=1 // loop_body
      %s32 = ssub.s32 %s27, 1
      %s33 = ssub.s32 %s27, 2
      %s34 = sadd.s32 %s27, 1
      %s35 = ssub.s32 %s27, %s34
      %p36 = scmp.eq.s32.totalorder %s35, 0
      %s38 = sadd.s32 %s37, 1
      %s39 = scalar_select %p36, %s37, %s38
      %p42 = pneg %p36
      %p43 = scmp.eq.s32.totalorder %s27, 1
      %p44 = por %p42, %p43
      %p45 = scmp.ne.s32.totalorder %s37, %s40
      %p46 = scmp.eq.s32.totalorder %s27, 0
      %p47 = por %p45, %p46
      %p48 = scmp.ne.s32.totalorder %s37, %s40
      %p49 = scmp.eq.s32.totalorder %s32, 1
      %p50 = por %p48, %p49
      %p51 = scmp.ne.s32.totalorder %s40, %s41
      %p52 = scmp.eq.s32.totalorder %s32, 0
      %p53 = por %p51, %p52
      %p54 = scmp.ne.s32.totalorder %s40, %s41
      %p55 = scmp.eq.s32.totalorder %s33, 1
      %p56 = por %p54, %p55
      %p58 = scmp.ne.s32.totalorder %s41, %s57
      %p59 = scmp.eq.s32.totalorder %s33, 0
      %p60 = por %p58, %p59
      %s61 = ssub.s32 %s27, %s34
      %p62 = scmp.eq.s32.totalorder %s61, 0
      %s64 = sadd.s32 %s63, 1
      %s65 = scalar_select %p62, %s63, %s64
      %p68 = pneg %p62
      %p69 = scmp.eq.s32.totalorder %s27, 1
      %p70 = por %p68, %p69
      %p71 = scmp.ne.s32.totalorder %s63, %s66
      %p72 = scmp.eq.s32.totalorder %s27, 0
      %p73 = por %p71, %p72
      %p74 = scmp.ne.s32.totalorder %s63, %s66
      %p75 = scmp.eq.s32.totalorder %s32, 1
      %p76 = por %p74, %p75
      %p77 = scmp.ne.s32.totalorder %s66, %s67
      %p78 = scmp.eq.s32.totalorder %s32, 0
      %p79 = por %p77, %p78
      %p80 = scmp.ne.s32.totalorder %s66, %s67
      %p81 = scmp.eq.s32.totalorder %s33, 1
      %p82 = por %p80, %p81
      %p84 = scmp.ne.s32.totalorder %s67, %s83
      %p85 = scmp.eq.s32.totalorder %s33, 0
      %p86 = por %p84, %p85
      %s87 = ssub.s32 %s27, %s34
      %p88 = scmp.eq.s32.totalorder %s87, 0
      %s90 = sadd.s32 %s89, 1
      %s91 = scalar_select %p88, %s89, %s90
      %p94 = pneg %p88
      %p95 = scmp.eq.s32.totalorder %s27, 1
      %p96 = por %p94, %p95
      %p97 = scmp.ne.s32.totalorder %s89, %s92
      %p98 = scmp.eq.s32.totalorder %s27, 0
      %p99 = por %p97, %p98
      %p100 = scmp.ne.s32.totalorder %s89, %s92
      %p101 = scmp.eq.s32.totalorder %s32, 1
      %p102 = por %p100, %p101
      %p103 = scmp.ne.s32.totalorder %s92, %s93
      %p104 = scmp.eq.s32.totalorder %s32, 0
      %p105 = por %p103, %p104
      %p106 = scmp.ne.s32.totalorder %s92, %s93
      %p107 = scmp.eq.s32.totalorder %s33, 1
      %p108 = por %p106, %p107
      %p110 = scmp.ne.s32.totalorder %s93, %s109
      %p111 = scmp.eq.s32.totalorder %s33, 0
      %p112 = por %p110, %p111
      %s113 = ssub.s32 %s27, %s34
      %p114 = scmp.eq.s32.totalorder %s113, 0
      %s116 = sadd.s32 %s115, 1
      %s117 = scalar_select %p114, %s115, %s116
      %p120 = pneg %p114
      %p121 = scmp.eq.s32.totalorder %s27, 1
      %p122 = por %p120, %p121
      %p123 = scmp.ne.s32.totalorder %s115, %s118
      %p124 = scmp.eq.s32.totalorder %s27, 0
      %p125 = por %p123, %p124
      %p126 = scmp.ne.s32.totalorder %s115, %s118
      %p127 = scmp.eq.s32.totalorder %s32, 1
      %p128 = por %p126, %p127
      %p129 = scmp.ne.s32.totalorder %s118, %s119
      %p130 = scmp.eq.s32.totalorder %s32, 0
      %p131 = por %p129, %p130
      %p132 = scmp.ne.s32.totalorder %s118, %s119
      %p133 = scmp.eq.s32.totalorder %s33, 1
      %p134 = por %p132, %p133
      %p136 = scmp.ne.s32.totalorder %s119, %s135
      %p137 = scmp.eq.s32.totalorder %s33, 0
      %p138 = por %p136, %p137
      %s139 = ssub.s32 %s27, %s34
      %p140 = scmp.eq.s32.totalorder %s139, 0
      %s142 = sadd.s32 %s141, 1
      %s143 = scalar_select %p140, %s141, %s142
      %p146 = pneg %p140
      %p147 = scmp.eq.s32.totalorder %s27, 1
      %p148 = por %p146, %p147
      %p149 = scmp.ne.s32.totalorder %s141, %s144
      %p150 = scmp.eq.s32.totalorder %s27, 0
      %p151 = por %p149, %p150
      %p152 = scmp.ne.s32.totalorder %s141, %s144
      %p153 = scmp.eq.s32.totalorder %s32, 1
      %p154 = por %p152, %p153
      %p155 = scmp.ne.s32.totalorder %s144, %s145
      %p156 = scmp.eq.s32.totalorder %s32, 0
      %p157 = por %p155, %p156
      %p158 = scmp.ne.s32.totalorder %s144, %s145
      %p159 = scmp.eq.s32.totalorder %s33, 1
      %p160 = por %p158, %p159
      %p162 = scmp.ne.s32.totalorder %s145, %s161
      %p163 = scmp.eq.s32.totalorder %s33, 0
      %p164 = por %p162, %p163
      %s166 = sadd.s32 %s165, 1
      %p169 = scmp.eq.s32.totalorder %s27, 1
      %p170 = scmp.ne.s32.totalorder %s165, %s167
      %p171 = scmp.eq.s32.totalorder %s27, 0
      %p172 = por %p170, %p171
      %p173 = scmp.ne.s32.totalorder %s165, %s167
      %p174 = scmp.eq.s32.totalorder %s32, 1
      %p175 = por %p173, %p174
      %p176 = scmp.ne.s32.totalorder %s167, %s168
      %p177 = scmp.eq.s32.totalorder %s32, 0
      %p178 = por %p176, %p177
      %p179 = scmp.ne.s32.totalorder %s167, %s168
      %p180 = scmp.eq.s32.totalorder %s33, 1
      %p181 = por %p179, %p180
      %p183 = scmp.ne.s32.totalorder %s168, %s182
      %p184 = scmp.eq.s32.totalorder %s33, 0
      %p185 = por %p183, %p184
      %s187 = sadd.s32 %s186, 1
      %p190 = scmp.eq.s32.totalorder %s27, 1
      %p191 = scmp.ne.s32.totalorder %s186, %s188
      %p192 = scmp.eq.s32.totalorder %s27, 0
      %p193 = por %p191, %p192
      %p194 = scmp.ne.s32.totalorder %s186, %s188
      %p195 = scmp.eq.s32.totalorder %s32, 1
      %p196 = por %p194, %p195
      %p197 = scmp.ne.s32.totalorder %s188, %s189
      %p198 = scmp.eq.s32.totalorder %s32, 0
      %p199 = por %p197, %p198
      %p200 = scmp.ne.s32.totalorder %s188, %s189
      %p201 = scmp.eq.s32.totalorder %s33, 1
      %p202 = por %p200, %p201
      %p204 = scmp.ne.s32.totalorder %s189, %s203
      %p205 = scmp.eq.s32.totalorder %s33, 0
      %p206 = por %p204, %p205
      %s208 = sadd.s32 %s207, 1
      %p211 = scmp.eq.s32.totalorder %s27, 1
      %p212 = scmp.ne.s32.totalorder %s207, %s209
      %p213 = scmp.eq.s32.totalorder %s27, 0
      %p214 = por %p212, %p213
      %p215 = scmp.ne.s32.totalorder %s207, %s209
      %p216 = scmp.eq.s32.totalorder %s32, 1
      %p217 = por %p215, %p216
      %p218 = scmp.ne.s32.totalorder %s209, %s210
      %p219 = scmp.eq.s32.totalorder %s32, 0
      %p220 = por %p218, %p219
      %p221 = scmp.ne.s32.totalorder %s209, %s210
      %p222 = scmp.eq.s32.totalorder %s33, 1
      %p223 = por %p221, %p222
      %p225 = scmp.ne.s32.totalorder %s210, %s224
      %p226 = scmp.eq.s32.totalorder %s33, 0
      %p227 = por %p225, %p226
      %s229 = sadd.s32 %s228, 1
      %p232 = scmp.eq.s32.totalorder %s27, 1
      %p233 = scmp.ne.s32.totalorder %s228, %s230
      %p234 = scmp.eq.s32.totalorder %s27, 0
      %p235 = por %p233, %p234
      %p236 = scmp.ne.s32.totalorder %s228, %s230
      %p237 = scmp.eq.s32.totalorder %s32, 1
      %p238 = por %p236, %p237
      %p239 = scmp.ne.s32.totalorder %s230, %s231
      %p240 = scmp.eq.s32.totalorder %s32, 0
      %p241 = por %p239, %p240
      %p242 = scmp.ne.s32.totalorder %s230, %s231
      %p243 = scmp.eq.s32.totalorder %s33, 1
      %p244 = por %p242, %p243
      %p246 = scmp.ne.s32.totalorder %s231, %s245
      %p247 = scmp.eq.s32.totalorder %s33, 0
      %p248 = por %p246, %p247
      %s250 = sadd.s32 %s249, 1
      %p253 = scmp.eq.s32.totalorder %s27, 1
      %p254 = scmp.ne.s32.totalorder %s249, %s251
      %p255 = scmp.eq.s32.totalorder %s27, 0
      %p256 = por %p254, %p255
      %p257 = scmp.ne.s32.totalorder %s249, %s251
      %p258 = scmp.eq.s32.totalorder %s32, 1
      %p259 = por %p257, %p258
      %p260 = scmp.ne.s32.totalorder %s251, %s252
      %p261 = scmp.eq.s32.totalorder %s32, 0
      %p262 = por %p260, %p261
      %p263 = scmp.ne.s32.totalorder %s251, %s252
      %p264 = scmp.eq.s32.totalorder %s33, 1
      %p265 = por %p263, %p264
      %p267 = scmp.ne.s32.totalorder %s252, %s266
      %p268 = scmp.eq.s32.totalorder %s33, 0
      %p269 = por %p267, %p268
      %s271 = sadd.s32 %s270, 1
      %p274 = scmp.eq.s32.totalorder %s27, 1
      %p275 = scmp.ne.s32.totalorder %s270, %s272
      %p276 = scmp.eq.s32.totalorder %s27, 0
      %p277 = por %p275, %p276
      %p278 = scmp.ne.s32.totalorder %s270, %s272
      %p279 = scmp.eq.s32.totalorder %s32, 1
      %p280 = por %p278, %p279
      %p281 = scmp.ne.s32.totalorder %s272, %s273
      %p282 = scmp.eq.s32.totalorder %s32, 0
      %p283 = por %p281, %p282
      %p284 = scmp.ne.s32.totalorder %s272, %s273
      %p285 = scmp.eq.s32.totalorder %s33, 1
      %p286 = por %p284, %p285
      %p288 = scmp.ne.s32.totalorder %s273, %s287
      %p289 = scmp.eq.s32.totalorder %s33, 0
      %p290 = por %p288, %p289
      %s291 = ssub.s32 %s27, %s34
      %p292 = scmp.eq.s32.totalorder %s291, 0
      %s294 = sadd.s32 %s293, 1
      %s295 = scalar_select %p292, %s293, %s294
      %p298 = pneg %p292
      %p299 = scmp.eq.s32.totalorder %s27, 1
      %p300 = por %p298, %p299
      %p301 = scmp.ne.s32.totalorder %s293, %s296
      %p302 = scmp.eq.s32.totalorder %s27, 0
      %p303 = por %p301, %p302
      %p304 = scmp.ne.s32.totalorder %s293, %s296
      %p305 = scmp.eq.s32.totalorder %s32, 1
      %p306 = por %p304, %p305
      %p307 = scmp.ne.s32.totalorder %s296, %s297
      %p308 = scmp.eq.s32.totalorder %s32, 0
      %p309 = por %p307, %p308
      %p310 = scmp.ne.s32.totalorder %s296, %s297
      %p311 = scmp.eq.s32.totalorder %s33, 1
      %p312 = por %p310, %p311
      %p314 = scmp.ne.s32.totalorder %s297, %s313
      %p315 = scmp.eq.s32.totalorder %s33, 0
      %p316 = por %p314, %p315
      %p317 = scmp.le.s32.totalorder 1, %s27
      %p318 = scmp.lt.s32.totalorder %s27, 3
      %p319 = pnand %p317, %p318
      %p320 = pneg %p319
      // Predicated region
      $region9: #{tpu_custom_call.1} parent=5 // pred_check
        _
      $region10: #{tpu_custom_call.1} parent=5 // pred_check_branch
        %322 = sbr.rel (%p319) target = $region12
      $region11: #{tpu_custom_call.1} parent=5 // pred_region
        %s323 = ssub.s32 %s27, 1
        // Predicated region
        $region13: #{tpu_custom_call.1} parent=11 // pred_check
          %p324 = pneg %p178
        $region14: #{tpu_custom_call.1} parent=11 // pred_check_branch
          %326 = sbr.rel (%p324) target = $region16
        $region15: #{tpu_custom_call.1} parent=11 // pred_region
          %s328 = ssub.s32 2304, 2304
          %329 = vsyncadd [#allocation9], %s328
          %s330 = sshll.u32 [#allocation8], 4
          %s331 = int_to_ptr.vmem [resolvable:$true] %s330
          %336 = dma.hbm_to_vmem [thread:$0]  %s5, 2304, %s331, [#allocation9], 128, 128, 8
        $region16: #{tpu_custom_call.1} parent=11 // pred_fallthru
          _
        // Predicated region
        $region17: #{tpu_custom_call.1} parent=11 // pred_check
          %p337 = pneg %p199
        $region18: #{tpu_custom_call.1} parent=11 // pred_check_branch
          %339 = sbr.rel (%p337) target = $region20
        $region19: #{tpu_custom_call.1} parent=11 // pred_region
          _
        $region20: #{tpu_custom_call.1} parent=11 // pred_fallthru
          _
        // Predicated region
        $region21: #{tpu_custom_call.1} parent=11 // pred_check
          %p340 = pneg %p220
        $region22: #{tpu_custom_call.1} parent=11 // pred_check_branch
          %342 = sbr.rel (%p340) target = $region24
        $region23: #{tpu_custom_call.1} parent=11 // pred_region
          _
        $region24: #{tpu_custom_call.1} parent=11 // pred_fallthru
          _
        // Predicated region
        $region25: #{tpu_custom_call.1} parent=11 // pred_check
          %p343 = pneg %p241
        $region26: #{tpu_custom_call.1} parent=11 // pred_check_branch
          %345 = sbr.rel (%p343) target = $region28
        $region27: #{tpu_custom_call.1} parent=11 // pred_region
          _
        $region28: #{tpu_custom_call.1} parent=11 // pred_fallthru
          _
        // Predicated region
        $region29: #{tpu_custom_call.1} parent=11 // pred_check
          %p346 = pneg %p262
        $region30: #{tpu_custom_call.1} parent=11 // pred_check_branch
          %348 = sbr.rel (%p346) target = $region32
        $region31: #{tpu_custom_call.1} parent=11 // pred_region
          %s350 = ssub.s32 1024, 1024
          %351 = vsyncadd [#allocation9], %s350
          %s352 = sshll.u32 [#allocation10], 4
          %s353 = int_to_ptr.vmem [resolvable:$true] %s352
          %358 = dma.hbm_to_vmem [thread:$0]  %s9, 1024, %s353, [#allocation9], 64, 64, 4
        $region32: #{tpu_custom_call.1} parent=11 // pred_fallthru
          _
        // Predicated region
        $region33: #{tpu_custom_call.1} parent=11 // pred_check
          %p359 = pneg %p283
        $region34: #{tpu_custom_call.1} parent=11 // pred_check_branch
          %361 = sbr.rel (%p359) target = $region36
        $region35: #{tpu_custom_call.1} parent=11 // pred_region
          _
        $region36: #{tpu_custom_call.1} parent=11 // pred_fallthru
          _
      $region12: #{tpu_custom_call.1} parent=5 // pred_fallthru
        _
      %p362 = scmp.lt.s32.totalorder %s27, 2
      // Predicated region
      $region37: #{tpu_custom_call.1} parent=5 // pred_check
        %p363 = pneg %p362
      $region38: #{tpu_custom_call.1} parent=5 // pred_check_branch
        %365 = sbr.rel (%p363) target = $region40
      $region39: #{tpu_custom_call.1} parent=5 // pred_region
        // Predicated region
        $region41: #{tpu_custom_call.1} parent=39 // pred_check
          %p366 = pneg %p47
        $region42: #{tpu_custom_call.1} parent=39 // pred_check_branch
          %368 = sbr.rel (%p366) target = $region44
        $region43: #{tpu_custom_call.1} parent=39 // pred_region
          %s369 = sand.u32 %s37, 1
          %s370 = scalar_lea.sflag [#allocation3], %s369
          %s371 = sand.u32 %s37, 1
          %s372 = smul.addr %s371, 16
          %s373 = scalar_lea.vmem [#allocation2], %s372
          %s374 = smul.u32 2, %s27
          %s376 = ssub.s32 256, 256
          %377 = vsyncadd %s370, %s376
          %s378 = smul.addr %s374, 128
          %s379 = scalar_lea.hbm %s0, %s378
          %s380 = sshll.u32 %s373, 4
          %s381 = int_to_ptr.vmem [resolvable:$true] %s380
          %386 = dma.hbm_to_vmem [thread:$0]  %s379, 256, %s381, %s370, 128, 128, 8
        $region44: #{tpu_custom_call.1} parent=39 // pred_fallthru
          _
        // Predicated region
        $region45: #{tpu_custom_call.1} parent=39 // pred_check
          %p387 = pneg %p73
        $region46: #{tpu_custom_call.1} parent=39 // pred_check_branch
          %389 = sbr.rel (%p387) target = $region48
        $region47: #{tpu_custom_call.1} parent=39 // pred_region
          %s390 = sand.u32 %s27, 1
          %s391 = scalar_lea.sflag [#allocation6], %s390
          %s392 = sand.u32 %s63, 1
          %s393 = smul.addr %s392, 16
          %s394 = scalar_lea.vmem [#allocation5], %s393
          %s395 = smul.u32 2, %s27
          %s397 = ssub.s32 256, 256
          %398 = vsyncadd %s391, %s397
          %s399 = smul.addr %s395, 128
          %s400 = scalar_lea.hbm %s1, %s399
          %s401 = sshll.u32 %s394, 4
          %s402 = int_to_ptr.vmem [resolvable:$true] %s401
          %407 = dma.hbm_to_vmem [thread:$0]  %s400, 256, %s402, %s391, 128, 128, 8
        $region48: #{tpu_custom_call.1} parent=39 // pred_fallthru
          _
        // Predicated region
        $region49: #{tpu_custom_call.1} parent=39 // pred_check
          %p408 = pneg %p99
        $region50: #{tpu_custom_call.1} parent=39 // pred_check_branch
          %410 = sbr.rel (%p408) target = $region52
        $region51: #{tpu_custom_call.1} parent=39 // pred_region
          %s411 = smul.u32 2, %s27
          %p412 = scmp.lt.s32.totalorder %s411, 3
          %s413 = scalar_select %p412, %s411, 3
          %s414 = smul.addr %s413, 8
          %s415 = scalar_lea.vmem %s2, %s414
          %s416 = smul.u32 2, %s27
        $region52: #{tpu_custom_call.1} parent=39 // pred_fallthru
          _
        // Predicated region
        $region53: #{tpu_custom_call.1} parent=39 // pred_check
          %p417 = pneg %p125
        $region54: #{tpu_custom_call.1} parent=39 // pred_check_branch
          %419 = sbr.rel (%p417) target = $region56
        $region55: #{tpu_custom_call.1} parent=39 // pred_region
          %s420 = smul.u32 2, %s27
          %p421 = scmp.lt.s32.totalorder %s420, 3
          %s422 = scalar_select %p421, %s420, 3
          %s423 = smul.addr %s422, 8
          %s424 = scalar_lea.vmem %s3, %s423
          %s425 = smul.u32 2, %s27
        $region56: #{tpu_custom_call.1} parent=39 // pred_fallthru
          _
        // Predicated region
        $region57: #{tpu_custom_call.1} parent=39 // pred_check
          %p426 = pneg %p151
        $region58: #{tpu_custom_call.1} parent=39 // pred_check_branch
          %428 = sbr.rel (%p426) target = $region60
        $region59: #{tpu_custom_call.1} parent=39 // pred_region
          %s429 = sand.u32 %s27, 1
          %s430 = scalar_lea.sflag [#allocation6], %s429
          %s431 = sand.u32 %s141, 1
          %s432 = smul.addr %s431, 16
          %s433 = scalar_lea.vmem [#allocation7], %s432
          %s434 = smul.u32 2, %s27
          %s436 = ssub.s32 256, 256
          %437 = vsyncadd %s430, %s436
          %s438 = smul.addr %s434, 128
          %s439 = scalar_lea.hbm %s4, %s438
          %s440 = sshll.u32 %s433, 4
          %s441 = int_to_ptr.vmem [resolvable:$true] %s440
          %446 = dma.hbm_to_vmem [thread:$0]  %s439, 256, %s441, %s430, 128, 128, 8
        $region60: #{tpu_custom_call.1} parent=39 // pred_fallthru
          _
      $region40: #{tpu_custom_call.1} parent=5 // pred_fallthru
        _
      %p447 = scmp.le.s32.totalorder 1, %s27
      %p448 = scmp.lt.s32.totalorder %s27, 3
      %p449 = pnand %p447, %p448
      %p450 = pneg %p449
      // Predicated region
      $region61: #{tpu_custom_call.1} parent=5 // pred_check
        _
      $region62: #{tpu_custom_call.1} parent=5 // pred_check_branch
        %452 = sbr.rel (%p449) target = $region64
      $region63: #{tpu_custom_call.1} parent=5 // pred_region
        %s453 = ssub.s32 %s27, 1
        %s454 = sand.u32 %s40, 1
        %s455 = scalar_lea.sflag [#allocation3], %s454
        %s456 = sand.u32 %s40, 1
        %s457 = smul.addr %s456, 16
        %s458 = scalar_lea.vmem [#allocation2], %s457
        // Predicated region
        $region65: #{tpu_custom_call.1} parent=63 // pred_check
          %p459 = pneg %p53
        $region66: #{tpu_custom_call.1} parent=63 // pred_check_branch
          %461 = sbr.rel (%p459) target = $region68
        $region67: #{tpu_custom_call.1} parent=63 // pred_region
          %462 = dma.done %s455, 256
        $region68: #{tpu_custom_call.1} parent=63 // pred_fallthru
          _
        %s463 = sand.u32 %s32, 1
        %s464 = scalar_lea.sflag [#allocation6], %s463
        %s465 = sand.u32 %s66, 1
        %s466 = smul.addr %s465, 16
        %s467 = scalar_lea.vmem [#allocation5], %s466
        // Predicated region
        $region69: #{tpu_custom_call.1} parent=63 // pred_check
          %p468 = pneg %p79
        $region70: #{tpu_custom_call.1} parent=63 // pred_check_branch
          %470 = sbr.rel (%p468) target = $region72
        $region71: #{tpu_custom_call.1} parent=63 // pred_region
          %471 = dma.done %s464, 256
        $region72: #{tpu_custom_call.1} parent=63 // pred_fallthru
          _
        %s472 = sand.u32 %s32, 1
        %s473 = scalar_lea.sflag [#allocation6], %s472
        %s474 = sand.u32 %s144, 1
        %s475 = smul.addr %s474, 16
        %s476 = scalar_lea.vmem [#allocation7], %s475
        // Predicated region
        $region73: #{tpu_custom_call.1} parent=63 // pred_check
          %p477 = pneg %p157
        $region74: #{tpu_custom_call.1} parent=63 // pred_check_branch
          %479 = sbr.rel (%p477) target = $region76
        $region75: #{tpu_custom_call.1} parent=63 // pred_region
          %480 = dma.done %s473, 256
        $region76: #{tpu_custom_call.1} parent=63 // pred_fallthru
          _
        // Predicated region
        $region77: #{tpu_custom_call.1} parent=63 // pred_check
          %p481 = pneg %p178
        $region78: #{tpu_custom_call.1} parent=63 // pred_check_branch
          %483 = sbr.rel (%p481) target = $region80
        $region79: #{tpu_custom_call.1} parent=63 // pred_region
          %484 = dma.done [#allocation9], 2304
        $region80: #{tpu_custom_call.1} parent=63 // pred_fallthru
          _
        // Predicated region
        $region81: #{tpu_custom_call.1} parent=63 // pred_check
          %p485 = pneg %p262
        $region82: #{tpu_custom_call.1} parent=63 // pred_check_branch
          %487 = sbr.rel (%p485) target = $region84
        $region83: #{tpu_custom_call.1} parent=63 // pred_region
          %488 = dma.done [#allocation9], 1024
        $region84: #{tpu_custom_call.1} parent=63 // pred_fallthru
          _
        %s489 = sand.u32 %s40, 1
        %s490 = scalar_lea.sflag [#allocation3], %s489
        %s491 = sand.u32 %s40, 1
        %s492 = smul.addr %s491, 16
        %s493 = scalar_lea.vmem [#allocation2], %s492
        %p494 = pneg %p53
        %p495 = pneg %p50
        %s496 = sand.u32 %s32, 1
        %s497 = scalar_lea.sflag [#allocation6], %s496
        %s498 = sand.u32 %s66, 1
        %s499 = smul.addr %s498, 16
        %s500 = scalar_lea.vmem [#allocation5], %s499
        %p501 = pneg %p79
        %p502 = pneg %p76
        %s503 = smul.u32 2, %s32
        %p504 = scmp.lt.s32.totalorder %s503, 3
        %s505 = scalar_select %p504, %s503, 3
        %s506 = smul.addr %s505, 8
        %s507 = scalar_lea.vmem %s2, %s506
        %p508 = pneg %p105
        %p509 = pneg %p102
        %s510 = smul.u32 2, %s32
        %p511 = scmp.lt.s32.totalorder %s510, 3
        %s512 = scalar_select %p511, %s510, 3
        %s513 = smul.addr %s512, 8
        %s514 = scalar_lea.vmem %s3, %s513
        %p515 = pneg %p131
        %p516 = pneg %p128
        %s517 = sand.u32 %s32, 1
        %s518 = scalar_lea.sflag [#allocation6], %s517
        %s519 = sand.u32 %s144, 1
        %s520 = smul.addr %s519, 16
        %s521 = scalar_lea.vmem [#allocation7], %s520
        %p522 = pneg %p157
        %p523 = pneg %p154
        %p524 = pneg %p178
        %p525 = pneg %p175
        %p526 = pneg %p199
        %p527 = pneg %p196
        %p528 = pneg %p220
        %p529 = pneg %p217
        %p530 = pneg %p241
        %p531 = pneg %p238
        %p532 = pneg %p262
        %p533 = pneg %p259
        %p534 = pneg %p283
        %p535 = pneg %p280
        %p536 = pneg %p309
        %p537 = pneg %p306
        %s538 = sand.u32 %s296, 1
        %s539 = scalar_lea.sflag [#allocation4], %s538
        %s540 = sand.u32 %s296, 1
        %s541 = smul.addr %s540, 16
        %s542 = scalar_lea.vmem [#allocation11], %s541
        %s543 = smul.u32 2, %s32
        %s544 = smul.u32 2, %s32
        %s545 = smul.u32 2, %s32
        %p546 = scmp.lt.s32.totalorder %s545, 3
        %s547 = scalar_select %p546, %s545, 3
        %s548 = smul.addr %s547, 8
        %s549 = scalar_lea.vmem %s2, %s548
        %s550 = smul.u32 2, %s32
        %s551 = smul.u32 2, %s32
        %p552 = scmp.lt.s32.totalorder %s551, 3
        %s553 = scalar_select %p552, %s551, 3
        %s554 = smul.addr %s553, 8
        %s555 = scalar_lea.vmem %s3, %s554
        %s556 = smul.u32 2, %s32
        %s557 = smul.u32 2, %s32
        %s558 = smul.u32 2, %s32
        %v560 = vld [vmem:[%s458] sm:$0xff]
        %v561 = vld [vmem:[%s458 + $0x8] sm:$0xff]
        %v562 = vld [vmem:[%s467] sm:$0xff]
        %v563 = vld [vmem:[%s467 + $0x8] sm:$0xff]
        %v564 = vld [vmem:[%s549] sm:$0xff]
        %v565 = vld [vmem:[%s549 + $0x8] sm:$0xff]
        %v566 = vld [vmem:[%s555] sm:$0xff]
        %v567 = vld [vmem:[%s555 + $0x8] sm:$0xff]
        %v568 = vld [vmem:[%s476] sm:$0xff]
        %v569 = vld [vmem:[%s476 + $0x8] sm:$0xff]
        %572 = vrot.lane.b32.xlu0 %v562, 32
        %v573 = vpop.permute.xlu0 %572
        %574 = vrot.lane.b32.xlu0 %v563, 32
        %v575 = vpop.permute.xlu0 %574
        %580 = vrot.lane.b32.xlu0 %v564, 64
        %v581 = vpop.permute.xlu0 %580
        %582 = vrot.lane.b32.xlu0 %v565, 64
        %v583 = vpop.permute.xlu0 %582
        %588 = vrot.lane.b32.xlu0 %v566, 80
        %v589 = vpop.permute.xlu0 %588
        %590 = vrot.lane.b32.xlu0 %v567, 80
        %v591 = vpop.permute.xlu0 %590
        %596 = vrot.lane.b32.xlu0 %v568, 96
        %v597 = vpop.permute.xlu0 %596
        %598 = vrot.lane.b32.xlu0 %v569, 96
        %v599 = vpop.permute.xlu0 %598
        %vm602 = vcmask 261120
        %v603 = vsel %vm602, %v560, %v573
        %v604 = vsel %vm602, %v561, %v575
        %vm605 = vcmask 523264
        %v606 = vsel %vm605, %v603, %v581
        %v607 = vsel %vm605, %v604, %v583
        %vm608 = vcmask 654336
        %v609 = vsel %vm608, %v606, %v589
        %v610 = vsel %vm608, %v607, %v591
        %vm611 = vcmask 785408
        %v612 = vsel %vm611, %v609, %v597
        %v613 = vsel %vm611, %v610, %v599
        %v614 = vpack.c.bf16 %v613, %v612
        %v615 = vpack.c.bf16 %v599, %v597
        %v616 = vld [vmem:[#allocation8] sm:$0xff]
        %v617 = vld [vmem:[#allocation8 + $0x8] sm:$0xff]
        %v618 = vld [vmem:[#allocation8 + $0x10] sm:$0xff]
        %v619 = vld [vmem:[#allocation8 + $0x18] sm:$0xff]
        %v620 = vld [vmem:[#allocation8 + $0x20] sm:$0xff]
        %v621 = vld [vmem:[#allocation8 + $0x28] sm:$0xff]
        %v622 = vld [vmem:[#allocation8 + $0x30] sm:$0xff]
        %v623 = vld [vmem:[#allocation8 + $0x38] sm:$0xff]
        %v624 = vld [vmem:[#allocation8 + $0x40] sm:$0xff]
        %v625 = vld [vmem:[#allocation8 + $0x48] sm:$0xff]
        %v626 = vld [vmem:[#allocation8 + $0x50] sm:$0xff]
        %v627 = vld [vmem:[#allocation8 + $0x58] sm:$0xff]
        %v628 = vld [vmem:[#allocation8 + $0x60] sm:$0xff]
        %v629 = vld [vmem:[#allocation8 + $0x68] sm:$0xff]
        %v630 = vld [vmem:[#allocation8 + $0x70] sm:$0xff]
        %v631 = vld [vmem:[#allocation8 + $0x78] sm:$0xff]
        %v632 = vld [vmem:[#allocation8 + $0x80] sm:$0xff]
        %v633 = vld [vmem:[#allocation8 + $0x88] sm:$0xff]
        %v634 = vld [vmem:[%s6] sm:$0x3]
        %v636 = vlaneseq
        %v637 = vshrl.u32 %v636, 7
        %v638 = vsub.s32 0, %v637
        %v639 = vrot.slane %v634, %v638
        %v640 = vlaneseq
        %v641 = vshrl.u32 %v640, 7
        %v642 = vsub.s32 1, %v641
        %v643 = vrot.slane %v634, %v642
        %v664 = vunpack.c.l.b16 %v616
        %v665 = vunpack.c.h.b16 %v616
        %v666 = vunpack.c.l.b16 %v617
        %v667 = vunpack.c.h.b16 %v617
        %v668 = vunpack.c.l.b16 %v618
        %v669 = vunpack.c.h.b16 %v618
        %v670 = vunpack.c.l.b16 %v619
        %v671 = vunpack.c.h.b16 %v619
        %v672 = vunpack.c.l.b16 %v620
        %v673 = vunpack.c.h.b16 %v620
        %v674 = vunpack.c.l.b16 %v621
        %v675 = vunpack.c.h.b16 %v621
        %v676 = vunpack.c.l.b16 %v622
        %v677 = vunpack.c.h.b16 %v622
        %v678 = vunpack.c.l.b16 %v623
        %v679 = vunpack.c.h.b16 %v623
        %v680 = vunpack.c.l.b16 %v624
        %v681 = vunpack.c.h.b16 %v624
        %v682 = vunpack.c.l.b16 %v625
        %v683 = vunpack.c.h.b16 %v625
        %v684 = vunpack.c.l.b16 %v626
        %v685 = vunpack.c.h.b16 %v626
        %v686 = vunpack.c.l.b16 %v627
        %v687 = vunpack.c.h.b16 %v627
        %v688 = vunpack.c.l.b16 %v628
        %v689 = vunpack.c.h.b16 %v628
        %v690 = vunpack.c.l.b16 %v629
        %v691 = vunpack.c.h.b16 %v629
        %v692 = vunpack.c.l.b16 %v630
        %v693 = vunpack.c.h.b16 %v630
        %v694 = vunpack.c.l.b16 %v631
        %v695 = vunpack.c.h.b16 %v631
        %v696 = vunpack.c.l.b16 %v632
        %v697 = vunpack.c.h.b16 %v632
        %v698 = vunpack.c.l.b16 %v633
        %v699 = vunpack.c.h.b16 %v633
        %v700 = vpack.c.b16 %v666, %v664
        %v701 = vpack.c.b16 %v667, %v665
        %v702 = vpack.c.b16 %v670, %v668
        %v703 = vpack.c.b16 %v671, %v669
        %v704 = vpack.c.b16 %v674, %v672
        %v705 = vpack.c.b16 %v675, %v673
        %v706 = vpack.c.b16 %v678, %v676
        %v707 = vpack.c.b16 %v679, %v677
        %v708 = vpack.c.b16 %v682, %v680
        %v709 = vpack.c.b16 %v683, %v681
        %v710 = vpack.c.b16 %v686, %v684
        %v711 = vpack.c.b16 %v687, %v685
        %v712 = vpack.c.b16 %v690, %v688
        %v713 = vpack.c.b16 %v691, %v689
        %v714 = vpack.c.b16 %v694, %v692
        %v715 = vpack.c.b16 %v695, %v693
        %v716 = vpack.c.b16 %v698, %v696
        %v717 = vpack.c.b16 %v699, %v697
        %vm736 = vcmask 130048
        %v738 = vsel %vm736, %v615, 0
        %740 = vmatprep.subr.bf16.mxu0 %v701
        %741 = vmatpush1.bf16.msra.mxu0 %v700
        %742 = vmatprep.subr.bf16.mxu0 %v703
        %743 = vmatpush1.bf16.msra.mxu0 %v702
        %744 = vmatprep.subr.bf16.mxu0 %v705
        %745 = vmatpush1.bf16.msra.mxu0 %v704
        %746 = vmatprep.subr.bf16.mxu0 %v707
        %747 = vmatpush1.bf16.msra.mxu0 %v706
        %748 = vmatprep.subr.bf16.mxu0 %v709
        %749 = vmatpush1.bf16.msra.mxu0 %v708
        %750 = vmatprep.subr.bf16.mxu0 %v711
        %751 = vmatpush1.bf16.msra.mxu0 %v710
        %752 = vmatprep.subr.bf16.mxu0 %v713
        %753 = vmatpush1.bf16.msra.mxu0 %v712
        %754 = vmatprep.subr.bf16.mxu0 %v715
        %755 = vmatpush1.bf16.msra.mxu0 %v714
        %756 = vmatprep.subr.bf16.mxu0 %v717
        %757 = vmatpush1.bf16.msra.mxu0 %v716
        %758 = vmatprep.subr.bf16.mxu0 0
        %759 = vmatpush1.bf16.msra.mxu0 0
        %760 = vmatprep.subr.bf16.mxu0 0
        %761 = vmatpush1.bf16.msra.mxu0 0
        %762 = vmatprep.subr.bf16.mxu0 0
        %763 = vmatpush1.bf16.msra.mxu0 0
        %764 = vmatprep.subr.bf16.mxu0 0
        %765 = vmatpush1.bf16.msra.mxu0 0
        %766 = vmatprep.subr.bf16.mxu0 0
        %767 = vmatpush1.bf16.msra.mxu0 0
        %768 = vmatprep.subr.bf16.mxu0 0
        %769 = vmatpush1.bf16.msra.mxu0 0
        %770 = vmatprep.subr.bf16.mxu0 0
        %771 = vmatpush1.bf16.msra.mxu0 0
        %772 = vmatprep.mubr.bf16.mxu0 %v738
        %773 = vmatmul.mubr.bf16.gmra.mrb[0].mxu0 %v614
        %v774 = vpop.f32.mrb[0].mxu0
        %v775 = vadd.f32 %v639, %v774
        %v776 = vpop.f32.mrb[0].mxu0
        %v777 = vadd.f32 %v643, %v776
        %v778 = vpop.f32.mrb[0].mxu0
        %v779 = vadd.f32 %v639, %v778
        %v780 = vpop.f32.mrb[0].mxu0
        %v781 = vadd.f32 %v643, %v780
        %782 = vdwg.mxu0
        %v783 = vpack.c.bf16 %v779, %v775
        %v784 = vpack.c.bf16 %v781, %v777
        %v785 = vld [vmem:[%s7] sm:$0xf]
        %v786 = vld [vmem:[%s7 + $0x4] sm:$0xf]
        %v787 = vld [vmem:[%s7 + $0x8] sm:$0xf]
        %v788 = vld [vmem:[%s7 + $0xc] sm:$0xf]
        %v789 = vld [vmem:[%s7 + $0x10] sm:$0xf]
        %v790 = vld [vmem:[%s7 + $0x14] sm:$0xf]
        %v791 = vld [vmem:[%s7 + $0x18] sm:$0xf]
        %v792 = vld [vmem:[%s7 + $0x1c] sm:$0xf]
        %v793 = vld [vmem:[%s7 + $0x20] sm:$0xf]
        %v794 = vld [vmem:[%s7 + $0x24] sm:$0xf]
        %v795 = vld [vmem:[%s7 + $0x28] sm:$0xf]
        %v796 = vld [vmem:[%s7 + $0x2c] sm:$0xf]
        %v797 = vld [vmem:[%s7 + $0x30] sm:$0xf]
        %v798 = vld [vmem:[%s7 + $0x34] sm:$0xf]
        %v799 = vld [vmem:[%s7 + $0x38] sm:$0xf]
        %v800 = vld [vmem:[%s7 + $0x3c] sm:$0xf]
        %v801 = vld [vmem:[%s7 + $0x40] sm:$0xf]
        %v802 = vld [vmem:[%s7 + $0x44] sm:$0xf]
        %v803 = vld [vmem:[%s7 + $0x48] sm:$0xf]
        %v804 = vld [vmem:[%s7 + $0x4c] sm:$0xf]
        %v805 = vld [vmem:[%s7 + $0x50] sm:$0xf]
        %v806 = vld [vmem:[%s7 + $0x54] sm:$0xf]
        %v807 = vld [vmem:[%s7 + $0x58] sm:$0xf]
        %v808 = vld [vmem:[%s7 + $0x5c] sm:$0xf]
        %v809 = vld [vmem:[%s8] sm:$0x1]
        %v811 = vlaneseq
        %v812 = vshrl.u32 %v811, 7
        %v813 = vsub.s32 0, %v812
        %v814 = vrot.slane %v809, %v813
        %v840 = vunpack.c.l.b16 %v785
        %v841 = vunpack.c.l.b16 %v786
        %v842 = vunpack.c.l.b16 %v787
        %v843 = vunpack.c.l.b16 %v788
        %v844 = vunpack.c.l.b16 %v789
        %v845 = vunpack.c.l.b16 %v790
        %v846 = vunpack.c.l.b16 %v791
        %v847 = vunpack.c.l.b16 %v792
        %v848 = vunpack.c.l.b16 %v793
        %v849 = vunpack.c.l.b16 %v794
        %v850 = vunpack.c.l.b16 %v795
        %v851 = vunpack.c.l.b16 %v796
        %v852 = vunpack.c.l.b16 %v797
        %v853 = vunpack.c.l.b16 %v798
        %v854 = vunpack.c.l.b16 %v799
        %v855 = vunpack.c.l.b16 %v800
        %v856 = vunpack.c.l.b16 %v801
        %v857 = vunpack.c.l.b16 %v802
        %v858 = vunpack.c.l.b16 %v803
        %v859 = vunpack.c.l.b16 %v804
        %v860 = vunpack.c.l.b16 %v805
        %v861 = vunpack.c.l.b16 %v806
        %v862 = vunpack.c.l.b16 %v807
        %v863 = vunpack.c.l.b16 %v808
        %v864 = vpack.c.b16 %v841, %v840
        %v865 = vpack.c.b16 %v843, %v842
        %v866 = vpack.c.b16 %v845, %v844
        %v867 = vpack.c.b16 %v847, %v846
        %v868 = vpack.c.b16 %v849, %v848
        %v869 = vpack.c.b16 %v851, %v850
        %v870 = vpack.c.b16 %v853, %v852
        %v871 = vpack.c.b16 %v855, %v854
        %v872 = vpack.c.b16 %v857, %v856
        %v873 = vpack.c.b16 %v859, %v858
        %v874 = vpack.c.b16 %v861, %v860
        %v875 = vpack.c.b16 %v863, %v862
        %v889 = vsel %vm605, %v784, 0
        %891 = vmatprep.subr.bf16.mxu0 0
        %892 = vmatpush1.bf16.msra.mxu0 %v864
        %893 = vmatprep.subr.bf16.mxu0 0
        %894 = vmatpush1.bf16.msra.mxu0 %v865
        %895 = vmatprep.subr.bf16.mxu0 0
        %896 = vmatpush1.bf16.msra.mxu0 %v866
        %897 = vmatprep.subr.bf16.mxu0 0
        %898 = vmatpush1.bf16.msra.mxu0 %v867
        %899 = vmatprep.subr.bf16.mxu0 0
        %900 = vmatpush1.bf16.msra.mxu0 %v868
        %901 = vmatprep.subr.bf16.mxu0 0
        %902 = vmatpush1.bf16.msra.mxu0 %v869
        %903 = vmatprep.subr.bf16.mxu0 0
        %904 = vmatpush1.bf16.msra.mxu0 %v870
        %905 = vmatprep.subr.bf16.mxu0 0
        %906 = vmatpush1.bf16.msra.mxu0 %v871
        %907 = vmatprep.subr.bf16.mxu0 0
        %908 = vmatpush1.bf16.msra.mxu0 %v872
        %909 = vmatprep.subr.bf16.mxu0 0
        %910 = vmatpush1.bf16.msra.mxu0 %v873
        %911 = vmatprep.subr.bf16.mxu0 0
        %912 = vmatpush1.bf16.msra.mxu0 %v874
        %913 = vmatprep.subr.bf16.mxu0 0
        %914 = vmatpush1.bf16.msra.mxu0 %v875
        %915 = vmatprep.subr.bf16.mxu0 0
        %916 = vmatpush1.bf16.msra.mxu0 0
        %917 = vmatprep.subr.bf16.mxu0 0
        %918 = vmatpush1.bf16.msra.mxu0 0
        %919 = vmatprep.subr.bf16.mxu0 0
        %920 = vmatpush1.bf16.msra.mxu0 0
        %921 = vmatprep.subr.bf16.mxu0 0
        %922 = vmatpush1.bf16.msra.mxu0 0
        %923 = vmatprep.mubr.bf16.mxu0 %v889
        %924 = vmatmul.mubr.bf16.gmra.mrb[0].mxu0 %v783
        %v925 = vpop.f32.mrb[0].mxu0
        %v926 = vadd.f32 %v814, %v925
        %v927 = vpop.f32.mrb[0].mxu0
        %v928 = vpop.f32.mrb[0].mxu0
        %v929 = vadd.f32 %v814, %v928
        %v930 = vpop.f32.mrb[0].mxu0
        %931 = vdwg.mxu0
        %v932 = vmax.f32 %v926, 0.0
        %v933 = vmax.f32 %v929, 0.0
        %v934 = vpack.c.bf16 %v933, %v932
        %v935 = vld [vmem:[#allocation10] sm:$0xf]
        %v936 = vld [vmem:[#allocation10 + $0x4] sm:$0xf]
        %v937 = vld [vmem:[#allocation10 + $0x8] sm:$0xf]
        %v938 = vld [vmem:[#allocation10 + $0xc] sm:$0xf]
        %v939 = vld [vmem:[#allocation10 + $0x10] sm:$0xf]
        %v940 = vld [vmem:[#allocation10 + $0x14] sm:$0xf]
        %v941 = vld [vmem:[#allocation10 + $0x18] sm:$0xf]
        %v942 = vld [vmem:[#allocation10 + $0x1c] sm:$0xf]
        %v943 = vld [vmem:[#allocation10 + $0x20] sm:$0xf]
        %v944 = vld [vmem:[#allocation10 + $0x24] sm:$0xf]
        %v945 = vld [vmem:[#allocation10 + $0x28] sm:$0xf]
        %v946 = vld [vmem:[#allocation10 + $0x2c] sm:$0xf]
        %v947 = vld [vmem:[#allocation10 + $0x30] sm:$0xf]
        %v948 = vld [vmem:[#allocation10 + $0x34] sm:$0xf]
        %v949 = vld [vmem:[#allocation10 + $0x38] sm:$0xf]
        %v950 = vld [vmem:[#allocation10 + $0x3c] sm:$0xf]
        %v951 = vld [vmem:[%s10] sm:$0x1]
        %v953 = vlaneseq
        %v954 = vshrl.u32 %v953, 7
        %v955 = vsub.s32 0, %v954
        %v956 = vrot.slane %v951, %v955
        %v974 = vunpack.c.l.b16 %v935
        %v975 = vunpack.c.l.b16 %v936
        %v976 = vunpack.c.l.b16 %v937
        %v977 = vunpack.c.l.b16 %v938
        %v978 = vunpack.c.l.b16 %v939
        %v979 = vunpack.c.l.b16 %v940
        %v980 = vunpack.c.l.b16 %v941
        %v981 = vunpack.c.l.b16 %v942
        %v982 = vunpack.c.l.b16 %v943
        %v983 = vunpack.c.l.b16 %v944
        %v984 = vunpack.c.l.b16 %v945
        %v985 = vunpack.c.l.b16 %v946
        %v986 = vunpack.c.l.b16 %v947
        %v987 = vunpack.c.l.b16 %v948
        %v988 = vunpack.c.l.b16 %v949
        %v989 = vunpack.c.l.b16 %v950
        %v990 = vpack.c.b16 %v975, %v974
        %v991 = vpack.c.b16 %v977, %v976
        %v992 = vpack.c.b16 %v979, %v978
        %v993 = vpack.c.b16 %v981, %v980
        %v994 = vpack.c.b16 %v983, %v982
        %v995 = vpack.c.b16 %v985, %v984
        %v996 = vpack.c.b16 %v987, %v986
        %v997 = vpack.c.b16 %v989, %v988
        %1006 = vmatprep.subr.bf16.mxu0 0
        %1007 = vmatpush1.bf16.msra.mxu0 %v990
        %1008 = vmatprep.subr.bf16.mxu0 0
        %1009 = vmatpush1.bf16.msra.mxu0 %v991
        %1010 = vmatprep.subr.bf16.mxu0 0
        %1011 = vmatpush1.bf16.msra.mxu0 %v992
        %1012 = vmatprep.subr.bf16.mxu0 0
        %1013 = vmatpush1.bf16.msra.mxu0 %v993
        %1014 = vmatprep.subr.bf16.mxu0 0
        %1015 = vmatpush1.bf16.msra.mxu0 %v994
        %1016 = vmatprep.subr.bf16.mxu0 0
        %1017 = vmatpush1.bf16.msra.mxu0 %v995
        %1018 = vmatprep.subr.bf16.mxu0 0
        %1019 = vmatpush1.bf16.msra.mxu0 %v996
        %1020 = vmatprep.subr.bf16.mxu0 0
        %1021 = vmatpush1.bf16.msra.mxu0 %v997
        %1022 = vmatprep.subr.bf16.mxu0 0
        %1023 = vmatpush1.bf16.msra.mxu0 0
        %1024 = vmatprep.subr.bf16.mxu0 0
        %1025 = vmatpush1.bf16.msra.mxu0 0
        %1026 = vmatprep.subr.bf16.mxu0 0
        %1027 = vmatpush1.bf16.msra.mxu0 0
        %1028 = vmatprep.subr.bf16.mxu0 0
        %1029 = vmatpush1.bf16.msra.mxu0 0
        %1030 = vmatprep.subr.bf16.mxu0 0
        %1031 = vmatpush1.bf16.msra.mxu0 0
        %1032 = vmatprep.subr.bf16.mxu0 0
        %1033 = vmatpush1.bf16.msra.mxu0 0
        %1034 = vmatprep.subr.bf16.mxu0 0
        %1035 = vmatpush1.bf16.msra.mxu0 0
        %1036 = vmatprep.subr.bf16.mxu0 0
        %1037 = vmatpush1.bf16.msra.mxu0 0
        %1038 = vmatprep.mubr.bf16.mxu0 0
        %1039 = vmatmul.mubr.bf16.gmra.mrb[0].mxu0 %v934
        %v1040 = vpop.f32.mrb[0].mxu0
        %v1041 = vadd.f32 %v956, %v1040
        %v1042 = vpop.f32.mrb[0].mxu0
        %v1043 = vpop.f32.mrb[0].mxu0
        %v1044 = vadd.f32 %v956, %v1043
        %v1045 = vpop.f32.mrb[0].mxu0
        %1046 = vdwg.mxu0
        %1047 = vst [vmem:[%s542] sm:$0xff] %v1041
        %1048 = vst [vmem:[%s542 + $0x8] sm:$0xff] %v1044
        %s1049 = sand.u32 %s296, 1
        %s1050 = scalar_lea.sflag [#allocation4], %s1049
        %s1051 = sand.u32 %s296, 1
        %s1052 = smul.addr %s1051, 16
        %s1053 = scalar_lea.vmem [#allocation11], %s1052
        // Predicated region
        $region85: #{tpu_custom_call.1} parent=63 // pred_check
          %p1054 = pneg %p306
        $region86: #{tpu_custom_call.1} parent=63 // pred_check_branch
          %1056 = sbr.rel (%p1054) target = $region88
        $region87: #{tpu_custom_call.1} parent=63 // pred_region
          %s1057 = smul.u32 2, %s32
          %s1059 = ssub.s32 256, 256
          %1060 = vsyncadd %s1050, %s1059
          %s1061 = smul.addr %s1057, 128
          %s1062 = scalar_lea.hbm %s11, %s1061
          %s1063 = sshll.u32 %s1053, 4
          %s1064 = int_to_ptr.vmem [resolvable:$true] %s1063
          %1069 = dma.vmem_to_hbm [thread:$0]  %s1064, 256, %s1062, %s1050, 128, 128, 8
        $region88: #{tpu_custom_call.1} parent=63 // pred_fallthru
          _
      $region64: #{tpu_custom_call.1} parent=5 // pred_fallthru
        _
      %p1070 = scmp.le.s32.totalorder 2, %s27
      // Predicated region
      $region89: #{tpu_custom_call.1} parent=5 // pred_check
        %p1071 = pneg %p1070
      $region90: #{tpu_custom_call.1} parent=5 // pred_check_branch
        %1073 = sbr.rel (%p1071) target = $region92
      $region91: #{tpu_custom_call.1} parent=5 // pred_region
        %s1074 = ssub.s32 %s27, 2
        // Predicated region
        $region93: #{tpu_custom_call.1} parent=91 // pred_check
          %p1075 = pneg %p312
        $region94: #{tpu_custom_call.1} parent=91 // pred_check_branch
          %1077 = sbr.rel (%p1075) target = $region96
        $region95: #{tpu_custom_call.1} parent=91 // pred_region
          %s1078 = sand.u32 %s297, 1
          %s1079 = scalar_lea.sflag [#allocation4], %s1078
          %s1080 = sand.u32 %s297, 1
          %s1081 = smul.addr %s1080, 16
          %s1082 = scalar_lea.vmem [#allocation11], %s1081
          %1083 = dma.done %s1079, 256
        $region96: #{tpu_custom_call.1} parent=91 // pred_fallthru
          _
      $region92: #{tpu_custom_call.1} parent=5 // pred_fallthru
        _
    $region6: #{tpu_custom_call.1} parent=1 // loop_footer
      %s31 = sadd.s32 1, %s27
    $region7: #{tpu_custom_call.1} parent=1 // loop_footer_branch
      %26 = sbr.rel target = $region3
    $region8: #{tpu_custom_call.1} parent=1 // loop_exit
      _
    %1084 = vsyncpa [#allocation3], 1
    %s1085 = scalar_lea.sflag [#allocation3], 1
    %1086 = vsyncpa %s1085, 1
    %1087 = vsyncpa [#allocation6], 1
    %s1088 = scalar_lea.sflag [#allocation6], 1
    %1089 = vsyncpa %s1088, 1
    %1090 = vsyncpa [#allocation9], 1
    %1091 = vsyncpa [#allocation4], 1
    %s1092 = scalar_lea.sflag [#allocation4], 1
    %1093 = vsyncpa %s1092, 1

</llo_original>
